<compile_context>
chip_gen: v7x
topology: tpu7x:2x2x1
jax: 0.10.0
libtpu: 0.0.40
codegen_flags: <defaults>
</compile_context>

<pallas_src>
import functools

import jax
import jax.numpy as jnp
from jax import lax
from jax.experimental import pallas as pl
from jax.experimental.pallas import tpu as pltpu


def _round_up(x, m):
    return ((x + m - 1) // m) * m


# -----------------------------------------------------------------------------
# One-time probe of pltpu.roll's lane-rotation direction (np.roll convention or
# the opposite), so the packed-gate extraction shifts are correct on any jaxlib.
# -----------------------------------------------------------------------------
@functools.lru_cache(maxsize=None)
def _roll_is_np_convention():
    def k(x_ref, o_ref):
        o_ref[...] = pltpu.roll(x_ref[...], 1, 1)

    x = jnp.tile(jnp.arange(128, dtype=jnp.float32)[None, :], (8, 1))
    out = pl.pallas_call(
        k, out_shape=jax.ShapeDtypeStruct((8, 128), jnp.float32))(x)
    # np.roll semantics: out[0,0] == x[0,-1] == 127 ; opposite: == x[0,1] == 1
    return bool(out[0, 0] == 127.0)


# -----------------------------------------------------------------------------
# Fused kernel: all LSTM layers + mean over time + MLP head.
# -----------------------------------------------------------------------------
def _make_fused_kernel(n_layers, seq_len, hidden, Hp, Gp, use_hseq, unroll,
                       roll_np):
    L = n_layers
    H = hidden
    inv_t = 1.0 / float(seq_len)

    if roll_np:   # result[j] = x[(j - shift) % Gp]
        sh_f, sh_g, sh_o = (Gp - H) % Gp, (Gp - 2 * H) % Gp, (Gp - 3 * H) % Gp
    else:         # result[j] = x[(j + shift) % Gp]
        sh_f, sh_g, sh_o = H, 2 * H, 3 * H

    def cell(gates, c):
        # gates: (BT, Gp) f32 holding packed [i|f|g|o] (PyTorch order), each H
        # lanes wide.  c: (BT, Hp) f32.  Lanes >= H of the returned h/c hold
        # bounded garbage that is killed downstream by zero weight rows.
        if H % 128 == 0:
            # Gate blocks are lane-aligned: slice directly, no rolls needed.
            i_g = jax.nn.sigmoid(gates[:, 0 * H:1 * H])
            f_g = jax.nn.sigmoid(gates[:, 1 * H:2 * H])
            g_g = jnp.tanh(gates[:, 2 * H:3 * H])
            o_g = jax.nn.sigmoid(gates[:, 3 * H:4 * H])
        else:
            # Two EUP ops over the whole packed vreg, alignment via XLU rolls.
            sig = jax.nn.sigmoid(gates)
            tnh = jnp.tanh(gates)
            i_g = sig[:, :Hp]
            f_g = pltpu.roll(sig, sh_f, 1)[:, :Hp]
            g_g = pltpu.roll(tnh, sh_g, 1)[:, :Hp]
            o_g = pltpu.roll(sig, sh_o, 1)[:, :Hp]
        c_new = f_g * c + i_g * g_g
        h_new = o_g * jnp.tanh(c_new)
        return h_new, c_new

    def kernel(x_ref, *refs):
        lstm_refs = refs[:3 * L]
        w1_ref, bm1_ref, w2_ref, bm2_ref, w3_ref, bm3_ref = refs[3 * L:3 * L + 6]
        out_ref = refs[3 * L + 6]
        scratch = refs[3 * L + 7:]
        pg_scr = scratch[0]                         # (T, BT, Gp) hoisted pre-gates
        hseq_scr = scratch[1] if use_hseq else None

        T = x_ref.shape[0]
        BT = x_ref.shape[1]
        zeros = jnp.zeros((BT, Hp), jnp.float32)

        def project(xin, wih_ref, b_ref):
            # Hoisted input projection (+ bias) for all T timesteps: one matmul.
            Tn, Bn, Dl = xin.shape
            p = jnp.dot(xin.reshape(Tn * Bn, Dl).astype(wih_ref.dtype),
                        wih_ref[...], preferred_element_type=jnp.float32)
            return p.reshape(Tn, Bn, Gp) + b_ref[...][None]

        if L == 2:
            # ------------- wavefront-pipelined 2-layer recurrence -------------
            wih0_ref, whh0_ref, b0_ref = lstm_refs[0:3]
            wih1_ref, whh1_ref, b1_ref = lstm_refs[3:6]

            pg_scr[...] = project(x_ref[...], wih0_ref, b0_ref)
            b1v = jnp.broadcast_to(b1_ref[...], (BT, Gp))   # hoisted broadcast

            def step0(t, h0, c0):
                gates = pg_scr[t] + jnp.dot(
                    h0.astype(whh0_ref.dtype), whh0_ref[...],
                    preferred_element_type=jnp.float32)
                return cell(gates, c0)

            def step1(h0_in, h1, c1):
                gates = (jnp.dot(h0_in.astype(wih1_ref.dtype), wih1_ref[...],
                                 preferred_element_type=jnp.float32)
                         + jnp.dot(h1.astype(whh1_ref.dtype), whh1_ref[...],
                                   preferred_element_type=jnp.float32)
                         + b1v)
                return cell(gates, c1)

            h0, c0 = step0(0, zeros, zeros)          # prologue: layer 0, t = 0

            def diag(t, carry):
                h0, c0, h1, c1, hsum = carry
                h1n, c1n = step1(h0, h1, c1)         # layer 1, time t
                h0n, c0n = step0(t + 1, h0, c0)      # layer 0, time t+1 (indep.)
                return (h0n, c0n, h1n, c1n, hsum + h1n)

            h0, c0, h1, c1, hsum = lax.fori_loop(
                0, T - 1, diag, (h0, c0, zeros, zeros, zeros), unroll=unroll)

            h1, _ = step1(h0, h1, c1)                # epilogue: layer 1, t = T-1
            hsum = hsum + h1
        else:
            # ------------- generic sequential path (any n_layers) -------------
            hsum = zeros
            for l in range(L):
                wih_ref, whh_ref, b_ref = lstm_refs[3 * l:3 * l + 3]
                xin = x_ref[...] if l == 0 else hseq_scr[...]
                pg_scr[...] = project(xin, wih_ref, b_ref)
                last = (l == L - 1)

                def step(t, carry, whh_ref=whh_ref, last=last):
                    h, c, hs = carry
                    gates = pg_scr[t] + jnp.dot(
                        h.astype(whh_ref.dtype), whh_ref[...],
                        preferred_element_type=jnp.float32)
                    h, c = cell(gates, c)
                    if last:
                        hs = hs + h
                    else:
                        hseq_scr[t] = h
                    return (h, c, hs)

                _, _, hsum = lax.fori_loop(0, T, step, (zeros, zeros, hsum),
                                           unroll=unroll)

        # -------- head: mean over time + (Linear+ReLU)x2 + Linear(H,128) -------
        m = hsum * inv_t
        z = jnp.dot(m.astype(w1_ref.dtype), w1_ref[...],
                    preferred_element_type=jnp.float32) + bm1_ref[...]
        z = jnp.maximum(z, 0.0)
        z = jnp.dot(z.astype(w2_ref.dtype), w2_ref[...],
                    preferred_element_type=jnp.float32) + bm2_ref[...]
        z = jnp.maximum(z, 0.0)
        out_ref[...] = (jnp.dot(z.astype(w3_ref.dtype), w3_ref[...],
                                preferred_element_type=jnp.float32)
                        + bm3_ref[...])

    return kernel


# -----------------------------------------------------------------------------
# Wrapper: pad to TPU-friendly shapes and launch the fused kernel.
# -----------------------------------------------------------------------------
def sequence_model_forward(x, packed):
    """x: (B, T, input_size) batch-first (module assumed batch_first=True via
    **kwargs).  Returns (B, out_dim)."""
    B, T, D = x.shape
    L = packed["n_layers"]
    H, Hp, Gp = packed["H"], packed["Hp"], packed["Gp"]
    Dp, OUTp = packed["Dp"], packed["OUTp"]

    # Batch tile: one sublane group at tiny batch; grows toward the MXU height
    # (128 rows) as the real batch grows.
    BT = min(128, _round_up(B, 8))
    Bp = _round_up(B, BT)

    # time-major, batch padded to sublanes, features padded to lanes
    xt = jnp.transpose(x, (1, 0, 2)).astype(jnp.float32)       # (T, B, D)
    xt = jnp.pad(xt, ((0, 0), (0, Bp - B), (0, Dp - D)))        # (T, Bp, Dp)

    flat_w = []
    in_specs = [pl.BlockSpec((T, BT, Dp), lambda b: (0, b, 0))]
    for l in range(L):
        wih, whh, bias = packed["lstm"][l]
        Dl = wih.shape[0]
        flat_w += [wih, whh, bias]
        in_specs += [
            pl.BlockSpec((Dl, Gp), lambda b: (0, 0)),
            pl.BlockSpec((Hp, Gp), lambda b: (0, 0)),
            pl.BlockSpec((1, Gp), lambda b: (0, 0)),
        ]
    (w1, b1), (w2, b2), (w3, b3) = packed["mlp"]
    flat_w += [w1, b1, w2, b2, w3, b3]
    in_specs += [
        pl.BlockSpec((Hp, Hp), lambda b: (0, 0)),
        pl.BlockSpec((1, Hp), lambda b: (0, 0)),
        pl.BlockSpec((Hp, Hp), lambda b: (0, 0)),
        pl.BlockSpec((1, Hp), lambda b: (0, 0)),
        pl.BlockSpec((Hp, OUTp), lambda b: (0, 0)),
        pl.BlockSpec((1, OUTp), lambda b: (0, 0)),
    ]

    use_hseq = L >= 3                          # only intermediate layers need it
    unroll = True if T <= 32 else 8            # partial unroll for long sequences
    scratch = [pltpu.VMEM((T, BT, Gp), jnp.float32)]   # layer-0 hoisted pre-gates
    if use_hseq:
        scratch.append(pltpu.VMEM((T, BT, Hp), jnp.float32))

    kernel = _make_fused_kernel(L, T, H, Hp, Gp, use_hseq, unroll,
                                packed["roll_np"])
    out = pl.pallas_call(
        kernel,
        out_shape=jax.ShapeDtypeStruct((Bp, OUTp), jnp.float32),
        grid_spec=pltpu.PrefetchScalarGridSpec(
            num_scalar_prefetch=0,
            grid=(Bp // BT,),                  # batch tiles; parallel across TCs
            in_specs=in_specs,
            out_specs=pl.BlockSpec((BT, OUTp), lambda b: (b, 0)),
            scratch_shapes=scratch,
        ),
        compiler_params=pltpu.CompilerParams(
            dimension_semantics=("parallel",),
        ),
    )(xt, *flat_w)
    return out[:B, :packed["out_dim"]]


# -----------------------------------------------------------------------------
# Parameter init (PyTorch-style uniform(-1/sqrt(H), 1/sqrt(H))), logical shapes.
# -----------------------------------------------------------------------------
def init_params(key, input_size, hidden_size, n_layers, out_dim=128):
    params = {"lstm": [], "mlp": []}
    k_lstm = 1.0 / jnp.sqrt(hidden_size)
    keys = jax.random.split(key, 4 * n_layers + 6)
    ki = 0
    for layer in range(n_layers):
        d_in = input_size if layer == 0 else hidden_size
        w_ih = jax.random.uniform(keys[ki], (4 * hidden_size, d_in),
                                  minval=-k_lstm, maxval=k_lstm); ki += 1
        w_hh = jax.random.uniform(keys[ki], (4 * hidden_size, hidden_size),
                                  minval=-k_lstm, maxval=k_lstm); ki += 1
        b_ih = jax.random.uniform(keys[ki], (4 * hidden_size,),
                                  minval=-k_lstm, maxval=k_lstm); ki += 1
        b_hh = jax.random.uniform(keys[ki], (4 * hidden_size,),
                                  minval=-k_lstm, maxval=k_lstm); ki += 1
        params["lstm"].append({
            "wih_t": w_ih.T.astype(jnp.float32),                    # (D_in, 4H)
            "whh_t": w_hh.T.astype(jnp.float32),                    # (H, 4H)
            "b": (b_ih + b_hh).reshape(1, -1).astype(jnp.float32),  # (1, 4H)
        })

    def lin_init(kw, kb, fan_in, fan_out):
        k = 1.0 / jnp.sqrt(fan_in)
        w = jax.random.uniform(kw, (fan_out, fan_in), minval=-k, maxval=k)
        b = jax.random.uniform(kb, (fan_out,), minval=-k, maxval=k)
        return w.T.astype(jnp.float32), b.reshape(1, -1).astype(jnp.float32)

    w1, b1 = lin_init(keys[ki], keys[ki + 1], hidden_size, hidden_size); ki += 2
    w2, b2 = lin_init(keys[ki], keys[ki + 1], hidden_size, hidden_size); ki += 2
    w3, b3 = lin_init(keys[ki], keys[ki + 1], hidden_size, out_dim); ki += 2
    params["mlp"] = [(w1, b1), (w2, b2), (w3, b3)]
    return params


# -----------------------------------------------------------------------------
# Pack params into the padded / packed kernel layout (done once, outside kernel).
# Gates stay packed contiguously [i|f|g|o] (4H wide) and are padded to Gp lanes;
# all padded rows/cols/bias entries are zero, so padded lanes never leak into
# real lanes anywhere in the recurrence or head.
# -----------------------------------------------------------------------------
def pack_params(params, input_size, hidden_size, out_dim=128,
                weight_dtype=jnp.bfloat16):
    H = hidden_size
    Hp = _round_up(H, 128)
    Gp = _round_up(4 * H, 128)
    Dp = _round_up(input_size, 128)
    OUTp = _round_up(out_dim, 128)

    def pad_cols(w, cp):
        return jnp.pad(w, ((0, 0), (0, cp - w.shape[1])))

    def pad_rows(w, rp):
        return jnp.pad(w, ((0, rp - w.shape[0]), (0, 0)))

    lstm = []
    for l, lp in enumerate(params["lstm"]):
        rows_p = Dp if l == 0 else Hp
        wih = pad_rows(pad_cols(lp["wih_t"], Gp), rows_p).astype(weight_dtype)
        whh = pad_rows(pad_cols(lp["whh_t"], Gp), Hp).astype(weight_dtype)
        bias = pad_cols(lp["b"], Gp).astype(jnp.float32)
        lstm.append((wih, whh, bias))

    def pad_lin(w, b, rp, cp):
        wp = jnp.pad(w, ((0, rp - w.shape[0]),
                         (0, cp - w.shape[1]))).astype(weight_dtype)
        bp = jnp.pad(b, ((0, 0), (0, cp - b.shape[1]))).astype(jnp.float32)
        return wp, bp

    (w1, b1), (w2, b2), (w3, b3) = params["mlp"]
    mlp = [pad_lin(w1, b1, Hp, Hp), pad_lin(w2, b2, Hp, Hp),
           pad_lin(w3, b3, Hp, OUTp)]

    return {"lstm": lstm, "mlp": mlp, "n_layers": len(params["lstm"]),
            "H": H, "Hp": Hp, "Gp": Gp, "Dp": Dp, "OUTp": OUTp,
            "out_dim": out_dim, "roll_np": _roll_is_np_convention()}


# -----------------------------------------------------------------------------
# Pure-JAX f32 reference (for correctness check), on the logical params.
# -----------------------------------------------------------------------------
def reference_forward(x, params):
    h_seq = jnp.transpose(x, (1, 0, 2)).astype(jnp.float32)  # (T, B, D)
    for lp in params["lstm"]:
        T, B, _ = h_seq.shape
        H = lp["whh_t"].shape[0]

        def step(carry, x_t, lp=lp, H=H):
            h, c = carry
            gates = x_t @ lp["wih_t"] + h @ lp["whh_t"] + lp["b"]
            i = jax.nn.sigmoid(gates[:, 0 * H:1 * H])
            f = jax.nn.sigmoid(gates[:, 1 * H:2 * H])
            g = jnp.tanh(gates[:, 2 * H:3 * H])
            o = jax.nn.sigmoid(gates[:, 3 * H:4 * H])
            c = f * c + i * g
            h = o * jnp.tanh(c)
            return (h, c), h

        init = (jnp.zeros((B, H), jnp.float32), jnp.zeros((B, H), jnp.float32))
        _, h_seq = jax.lax.scan(step, init, h_seq)
    m = jnp.mean(h_seq, axis=0)
    (w1, b1), (w2, b2), (w3, b3) = params["mlp"]
    z = jnp.maximum(m @ w1 + b1, 0.0)
    z = jnp.maximum(z @ w2 + b2, 0.0)
    return z @ w3 + b3


if __name__ == "__main__":
    B, T, INPUT, HIDDEN, N_LAYERS = 2, 8, 4, 32, 2

    x = jax.random.normal(jax.random.PRNGKey(0), (B, T, INPUT), dtype=jnp.float32)
    params = init_params(jax.random.PRNGKey(42), INPUT, HIDDEN, N_LAYERS)
    ref = jax.block_until_ready(reference_forward(x, params))

    # 1) Exact-semantics check: f32 weights in the kernel vs the f32 reference.
    packed_f32 = pack_params(params, INPUT, HIDDEN, weight_dtype=jnp.float32)
    out_f32 = jax.block_until_ready(sequence_model_forward(x, packed_f32))
    assert out_f32.shape == (B, 128), out_f32.shape
    assert jnp.allclose(out_f32, ref, rtol=1e-3, atol=1e-3), \
        f"f32 max abs diff {jnp.max(jnp.abs(out_f32 - ref))}"

    # 2) Performance configuration: bf16 weights (f32 accumulate / state math).
    packed_bf16 = pack_params(params, INPUT, HIDDEN)   # default: bf16 weights
    out_bf16 = jax.block_until_ready(sequence_model_forward(x, packed_bf16))
    assert out_bf16.shape == (B, 128), out_bf16.shape
    assert jnp.allclose(out_bf16, ref, rtol=5e-2, atol=5e-2), \
        f"bf16 max abs diff {jnp.max(jnp.abs(out_bf16 - ref))}"

    print("KERNEL_OK")
</pallas_src>

<mosaic_0001>
module attributes {stable_mosaic.version = 11 : i64} {
  func.func @k(%arg0: memref<8x128xf32, #tpu.memory_space<vmem>>, %arg1: memref<8x128xf32, #tpu.memory_space<vmem>>) attributes {dimension_semantics = [], scalar_prefetch = 0 : i64, scratch_operands = 0 : i64, tpu.core_type = #tpu.core_type<tc>} {
    %c0 = arith.constant 0 : index
    %c0_0 = arith.constant 0 : index
    %0 = vector.load %arg0[%c0, %c0_0] : memref<8x128xf32, #tpu.memory_space<vmem>>, vector<8x128xf32>
    %c1_i32 = arith.constant 1 : i32
    %1 = tpu.dynamic_rotate %0 by %c1_i32 dim 1 : vector<8x128xf32>, i32 -> vector<8x128xf32>
    %c0_1 = arith.constant 0 : index
    %c0_2 = arith.constant 0 : index
    %2 = vector.load %arg1[%c0_1, %c0_2] : memref<8x128xf32, #tpu.memory_space<vmem>>, vector<8x128xf32>
    tpu.vector_store %arg1[%c0_1, %c0_2], %1 {strides = array<i32>} : memref<8x128xf32, #tpu.memory_space<vmem>>, vector<8x128xf32>,
    return
  }
}

</mosaic_0001>

<llo_original>
// kernel: tpu_custom_call.1
$region0: #{tpu_custom_call.1}
  #allocation0 [shape = 'u32[]', space=smem, size = 0x4, offset = 0x4, fixed_abs, tag = 'smem constant byte address 0x4 - core index']
  #allocation1 [shape = 'u32[144,128]{1,0:T(1,128)}', space=vmem, size = 0x12000, scoped, tag = 'internal scratch']
  %s0 = inlined_call_operand.hbm [shape: f32[8,128], index: 0, kind: input, shape index: {}]
  %s1 = inlined_call_operand.hbm [shape: f32[8,128], index: 1, kind: output, shape index: {}]
  %s2 = sld [smem:[#allocation0]]
  $region18: #{tpu_custom_call.1} parent=0
    _
  %s4 = ssub.s32 1, %s2
  %s5 = scalar_select 0, %s4, %s2
  $region1: #{tpu_custom_call.1} parent=0
    #allocation2 [shape = 'u8[4096]{0}', space=vmem, size = 0x1000, scoped, tag = 'input window, operand 0, single buffered']
    #allocation3 [shape = 's32[1]{0}', space=sflag, size = 0x4, scoped, tag = 'scoped memory for tpu_custom_call.1']
    #allocation4 [shape = 's32[1]{0}', space=sflag, size = 0x4, scoped, tag = 'scoped memory for tpu_custom_call.1']
    #allocation5 [shape = 'u8[4096]{0}', space=vmem, size = 0x1000, scoped, tag = 'output window, operand 0, single buffered']
    %6 = vsyncpa [#allocation3], 0
    %7 = vsyncpa [#allocation4], 0
    // Predicated region
    $region2: #{tpu_custom_call.1} parent=1 // pred_check
      _
    $region3: #{tpu_custom_call.1} parent=1 // pred_check_branch
      %9 = sbr.rel (0) target = $region5
    $region4: #{tpu_custom_call.1} parent=1 // pred_region
      %s11 = ssub.s32 128, 128
      %12 = vsyncadd [#allocation3], %s11
      %s14 = sshll.u32 [#allocation2], 4
      %s15 = int_to_ptr.vmem [resolvable:$true] %s14
      %17 = dma.hbm_to_vmem [thread:$0]  %s0, 128, %s15, [#allocation3]
    $region5: #{tpu_custom_call.1} parent=1 // pred_fallthru
      _
    // Predicated region
    $region6: #{tpu_custom_call.1} parent=1 // pred_check
      _
    $region7: #{tpu_custom_call.1} parent=1 // pred_check_branch
      %19 = sbr.rel (0) target = $region9
    $region8: #{tpu_custom_call.1} parent=1 // pred_region
      %20 = dma.done [#allocation3], 128
    $region9: #{tpu_custom_call.1} parent=1 // pred_fallthru
      _
    %v21 = vld [vmem:[#allocation2] sm:$0xff]
    %22 = vrot.lane.b32.xlu0 %v21, 1
    %v23 = vpop.permute.xlu0 %22
    %24 = vst [vmem:[#allocation5] sm:$0xff] %v23
    // Predicated region
    $region10: #{tpu_custom_call.1} parent=1 // pred_check
      _
    $region11: #{tpu_custom_call.1} parent=1 // pred_check_branch
      %26 = sbr.rel (0) target = $region13
    $region12: #{tpu_custom_call.1} parent=1 // pred_region
      %s28 = ssub.s32 128, 128
      %29 = vsyncadd [#allocation4], %s28
      %s31 = sshll.u32 [#allocation5], 4
      %s32 = int_to_ptr.vmem [resolvable:$true] %s31
      %34 = dma.vmem_to_hbm [thread:$0]  %s32, 128, %s1, [#allocation4]
    $region13: #{tpu_custom_call.1} parent=1 // pred_fallthru
      _
    // Predicated region
    $region14: #{tpu_custom_call.1} parent=1 // pred_check
      _
    $region15: #{tpu_custom_call.1} parent=1 // pred_check_branch
      %36 = sbr.rel (0) target = $region17
    $region16: #{tpu_custom_call.1} parent=1 // pred_region
      %37 = dma.done [#allocation4], 128
    $region17: #{tpu_custom_call.1} parent=1 // pred_fallthru
      _
    %38 = vsyncpa [#allocation3], 1
    %39 = vsyncpa [#allocation4], 1

</llo_original>
